<compile_context>
chip_gen: v5e
topology: v5e:2x2
jax: 0.10.0
libtpu: 0.0.40
codegen_flags: <defaults>
</compile_context>

<pallas_src>
import jax
import jax.numpy as jnp
from jax.experimental import pallas as pl
from jax.experimental.pallas import tpu as pltpu


def _round_up(x, m):
    return ((x + m - 1) // m) * m


def _normalize_kernel(x_ref, p_ref, o_ref):
    # x_ref: (row_tile, hw_tile) input dtype
    # p_ref: (row_tile, 2) f32 -- column 0 = mean, column 1 = 1/std (per row)
    x = x_ref[...].astype(jnp.float32)
    p = p_ref[...]
    mean = p[:, 0:1]       # (row_tile, 1), lane-broadcast against x
    inv_std = p[:, 1:2]
    o_ref[...] = ((x - mean) * inv_std).astype(o_ref.dtype)


def _tpu_tuning():
    """Generation-specific (block byte budget, vmem_limit_bytes, min grid blocks)."""
    try:
        kind = jax.devices()[0].device_kind.lower()
    except Exception:
        kind = ""
    if "v7" in kind:
        # v7x: 64 MiB VMEM per TC, 2 TCs share 3.2 TB/s HBM -> smaller blocks,
        # guarantee >= 2 parallel grid steps so both cores get work.
        return 4 << 20, 48 << 20, 2
    if "v5" in kind or "v6" in kind:
        # v5e/v6e: 128 MiB VMEM -> big blocks, fewer grid steps.
        return 8 << 20, 64 << 20, 1
    # Unknown / older generation: stay conservative, keep default scoped VMEM.
    return 2 << 20, None, 1


def _choose_tiles(R, HW, itemsize, block_budget_bytes, min_blocks):
    """Pick (row_tile, hw_tile): ~block_budget_bytes of input dtype per block,
    preferring whole rows (fully contiguous HBM DMAs)."""
    row_align = max(8, 32 // max(itemsize, 1))          # sublane packing per dtype
    budget_elems = max(block_budget_bytes // itemsize, row_align * 128)

    if HW * row_align <= budget_elems:
        # Whole rows fit in the budget: hw_tile == full extent (always legal).
        hw_tile = HW
        max_rows = max(row_align, (budget_elems // HW) // row_align * row_align)
        row_tile = min(max_rows, _round_up(R, row_align))
    else:
        # Very large images: one sublane-group of rows, lane tile multiple of 128.
        row_tile = row_align
        hw_tile = max(128, (budget_elems // row_align) // 128 * 128)
        hw_tile = min(hw_tile, _round_up(HW, 128))

    # Megacore: make sure there are enough grid steps to shard (v7x).
    def n_blocks(rt, ht):
        return pl.cdiv(R, rt) * pl.cdiv(HW, ht)

    while n_blocks(row_tile, hw_tile) < min_blocks:
        if row_tile > row_align:
            row_tile = max(row_align, _round_up(row_tile // 2, row_align))
        elif hw_tile == HW and HW > 128:
            hw_tile = max(128, _round_up(pl.cdiv(HW, 2), 128))
        elif hw_tile > 128 and hw_tile != HW:
            hw_tile = max(128, _round_up(hw_tile // 2, 128))
        else:
            break
    return row_tile, hw_tile


def normalization_forward(img, mean, std):
    """img: (N, C, H, W); mean, std: (C,).

    Returns (img - mean[:, None, None]) / std[:, None, None], same dtype as img.
    """
    N, C, H, W = img.shape
    R = N * C
    HW = H * W
    itemsize = jnp.dtype(img.dtype).itemsize

    # Lane-dense slab: one (n, c) row per channel instance, pixels on lanes.
    # Pure reshape of a contiguous NCHW array -> free view, no extra HBM pass.
    x2d = img.reshape(R, HW)

    # Fused per-row params (f32): col 0 = mean, col 1 = 1/std.  Only C scalars
    # pay the reciprocal; the kernel is a pure VALU sub + mul.
    mean_f = mean.astype(jnp.float32)
    inv_std_f = 1.0 / std.astype(jnp.float32)
    params = jnp.broadcast_to(
        jnp.stack([mean_f, inv_std_f], axis=-1)[None], (N, C, 2)).reshape(R, 2)

    block_budget, vmem_limit, min_blocks = _tpu_tuning()
    row_tile, hw_tile = _choose_tiles(R, HW, itemsize, block_budget, min_blocks)
    grid = (pl.cdiv(R, row_tile), pl.cdiv(HW, hw_tile))

    cost = pl.CostEstimate(
        flops=2 * R * HW,
        transcendentals=0,
        bytes_accessed=2 * R * HW * itemsize + params.size * 4,
    )

    out2d = pl.pallas_call(
        _normalize_kernel,
        out_shape=jax.ShapeDtypeStruct((R, HW), img.dtype),
        grid_spec=pltpu.PrefetchScalarGridSpec(
            num_scalar_prefetch=0,
            grid=grid,
            in_specs=[
                pl.BlockSpec((row_tile, hw_tile), lambda i, j: (i, j)),
                # Params are invariant along the inner (hw) grid axis, so the
                # tiny (row_tile, 2) tile is not refetched per hw block.
                pl.BlockSpec((row_tile, 2), lambda i, j: (i, 0)),
            ],
            out_specs=pl.BlockSpec((row_tile, hw_tile), lambda i, j: (i, j)),
        ),
        compiler_params=pltpu.CompilerParams(
            dimension_semantics=("parallel", "parallel"),
            vmem_limit_bytes=vmem_limit,
        ),
        cost_estimate=cost,
    )(x2d, params)

    return out2d.reshape(N, C, H, W)


if __name__ == "__main__":
    key = jax.random.PRNGKey(0)
    k_img, k_mean, k_std = jax.random.split(key, 3)

    N, C, H, W = 2, 4, 16, 16
    img = jax.random.normal(k_img, (N, C, H, W), dtype=jnp.float32)

    # Deterministic "parameters" (the PyTorch module stores mean/std at init).
    mean = jax.random.normal(k_mean, (C,), dtype=jnp.float32) * 0.1 + 0.5
    std = jax.random.uniform(k_std, (C,), dtype=jnp.float32, minval=0.2, maxval=0.4)

    out = normalization_forward(img, mean, std)
    out = jax.block_until_ready(out)

    # Reference (pure JAX) check of the forward semantics.
    ref = (img - mean.reshape(1, C, 1, 1)) / std.reshape(1, C, 1, 1)
    assert out.shape == (N, C, H, W)
    assert out.dtype == img.dtype
    assert jnp.allclose(out, ref, atol=1e-5, rtol=1e-5)

    print("KERNEL_OK")
</pallas_src>

<mosaic_0001>
module attributes {stable_mosaic.version = 11 : i64} {
  func.func @_normalize_kernel(%arg0: i32, %arg1: i32, %arg2: memref<8x256xf32, #tpu.memory_space<vmem>>, %arg3: memref<8x2xf32, #tpu.memory_space<vmem>>, %arg4: memref<8x256xf32, #tpu.memory_space<vmem>>) attributes {dimension_semantics = [#tpu.dimension_semantics<parallel>, #tpu.dimension_semantics<parallel>], iteration_bounds = array<i64: 1, 1>, scalar_prefetch = 0 : i64, scratch_operands = 0 : i64, tpu.core_type = #tpu.core_type<tc>, window_params = [{transform_indices = @transform_0, window_bounds = array<i64: 8, 256>}, {transform_indices = @transform_1, window_bounds = array<i64: 8, 2>}, {transform_indices = @transform_2, window_bounds = array<i64: 8, 256>}]} {
    %c0 = arith.constant 0 : index
    %c0_0 = arith.constant 0 : index
    %0 = vector.load %arg2[%c0, %c0_0] : memref<8x256xf32, #tpu.memory_space<vmem>>, vector<8x256xf32>
    %c0_1 = arith.constant 0 : index
    %c0_2 = arith.constant 0 : index
    %1 = vector.load %arg3[%c0_1, %c0_2] : memref<8x2xf32, #tpu.memory_space<vmem>>, vector<8x2xf32>
    %2 = vector.extract_strided_slice %1 {offsets = [0, 0], sizes = [8, 1], strides = [1, 1]} : vector<8x2xf32> to vector<8x1xf32>
    %3 = vector.extract_strided_slice %1 {offsets = [0, 1], sizes = [8, 1], strides = [1, 1]} : vector<8x2xf32> to vector<8x1xf32>
    %4 = vector.broadcast %2 : vector<8x1xf32> to vector<8x256xf32>
    %5 = arith.subf %0, %4 : vector<8x256xf32>
    %6 = vector.broadcast %3 : vector<8x1xf32> to vector<8x256xf32>
    %7 = arith.mulf %5, %6 : vector<8x256xf32>
    %c0_3 = arith.constant 0 : index
    %c0_4 = arith.constant 0 : index
    %8 = vector.load %arg4[%c0_3, %c0_4] : memref<8x256xf32, #tpu.memory_space<vmem>>, vector<8x256xf32>
    tpu.vector_store %arg4[%c0_3, %c0_4], %7 {strides = array<i32>} : memref<8x256xf32, #tpu.memory_space<vmem>>, vector<8x256xf32>,
    return
  }
  func.func @transform_0(%arg0: i32, %arg1: i32) -> (i32, i32) {
    %c0_i32 = arith.constant 0 : i32
    return %arg0, %arg1 : i32, i32
  }
  func.func @transform_1(%arg0: i32, %arg1: i32) -> (i32, i32) {
    %c0_i32 = arith.constant 0 : i32
    %c0_i32_0 = arith.constant 0 : i32
    return %arg0, %c0_i32 : i32, i32
  }
  func.func @transform_2(%arg0: i32, %arg1: i32) -> (i32, i32) {
    %c0_i32 = arith.constant 0 : i32
    return %arg0, %arg1 : i32, i32
  }
}

</mosaic_0001>

<llo_original>
// kernel: tpu_custom_call.1
$region0: #{tpu_custom_call.1}
  #allocation0 [shape = 'u32[]', space=smem, size = 0x4, offset = 0x4, fixed_abs, tag = 'smem constant byte address 0x4 - core index']
  #allocation1 [shape = 'u32[72,128]{1,0:T(1,128)}', space=vmem, size = 0x9000, scoped, tag = 'internal scratch']
  %s0 = inlined_call_operand.hbm [shape: f32[8,256], index: 0, kind: input, shape index: {}]
  %s1 = inlined_call_operand.vmem [shape: f32[8,2], index: 1, kind: input, shape index: {}]
  %s2 = inlined_call_operand.hbm [shape: f32[8,256], index: 2, kind: output, shape index: {}]
  %s3 = sld [smem:[#allocation0]]
  $region22: #{tpu_custom_call.1} parent=0
    _
  %s5 = ssub.s32 1, %s3
  %s6 = scalar_select 0, %s5, %s3
  $region1: #{tpu_custom_call.1} parent=0
    #allocation2 [shape = 'u8[8192]{0}', space=vmem, size = 0x2000, scoped, tag = 'input window, operand 0, single buffered']
    #allocation3 [shape = 's32[1]{0}', space=sflag, size = 0x4, scoped, tag = 'scoped memory for tpu_custom_call.1']
    #allocation4 [shape = 's32[1]{0}', space=sflag, size = 0x4, scoped, tag = 'scoped memory for tpu_custom_call.1']
    #allocation5 [shape = 'u8[8192]{0}', space=vmem, size = 0x2000, scoped, tag = 'output window, operand 0, single buffered']
    %7 = vsyncpa [#allocation3], 0
    %8 = vsyncpa [#allocation4], 0
    // Predicated region
    $region2: #{tpu_custom_call.1} parent=1 // pred_check
      _
    $region3: #{tpu_custom_call.1} parent=1 // pred_check_branch
      %10 = sbr.rel (0) target = $region5
    $region4: #{tpu_custom_call.1} parent=1 // pred_region
      %12 = vsyncadd [#allocation3], 0
      %s14 = sshll.u32 %s0, 4
      %s15 = int_to_ptr.hbm [resolvable:$true] %s14
      %s16 = sshll.u32 [#allocation2], 4
      %s17 = int_to_ptr.vmem [resolvable:$true] %s16
      %19 = dma.hbm_to_vmem [thread:$0]  %s15, 256, %s17, [#allocation3]
    $region5: #{tpu_custom_call.1} parent=1 // pred_fallthru
      _
    // Predicated region
    $region6: #{tpu_custom_call.1} parent=1 // pred_check
      _
    $region7: #{tpu_custom_call.1} parent=1 // pred_check_branch
      %21 = sbr.rel (0) target = $region9
    $region8: #{tpu_custom_call.1} parent=1 // pred_region
      _
    $region9: #{tpu_custom_call.1} parent=1 // pred_fallthru
      _
    // Predicated region
    $region10: #{tpu_custom_call.1} parent=1 // pred_check
      _
    $region11: #{tpu_custom_call.1} parent=1 // pred_check_branch
      %23 = sbr.rel (0) target = $region13
    $region12: #{tpu_custom_call.1} parent=1 // pred_region
      %25 = dma.done [#allocation3], 256
    $region13: #{tpu_custom_call.1} parent=1 // pred_fallthru
      _
    %v26 = vld [vmem:[#allocation2] sm:$0xff]
    %v27 = vld [vmem:[#allocation2 + $0x8] sm:$0xff]
    %v28 = vld [vmem:[%s1] sm:$0xff]
    %30 = vset.pattern.permute.xlu0 0
    %31 = vperm.xlu0 %30, %v28
    %v32 = vpop.permute.xlu0 %31
    %v34 = vsub.f32 %v26, %v32
    %v35 = vsub.f32 %v27, %v32
    %36 = vset.pattern.permute.xlu0 1
    %37 = vperm.xlu0 %36, %v28
    %v38 = vpop.permute.xlu0 %37
    %v40 = vmul.f32 %v34, %v38
    %v41 = vmul.f32 %v35, %v38
    %42 = vst [vmem:[#allocation5] sm:$0xff] %v40
    %43 = vst [vmem:[#allocation5 + $0x8] sm:$0xff] %v41
    // Predicated region
    $region14: #{tpu_custom_call.1} parent=1 // pred_check
      _
    $region15: #{tpu_custom_call.1} parent=1 // pred_check_branch
      %45 = sbr.rel (0) target = $region17
    $region16: #{tpu_custom_call.1} parent=1 // pred_region
      %47 = vsyncadd [#allocation4], 0
      %s49 = sshll.u32 [#allocation5], 4
      %s50 = int_to_ptr.vmem [resolvable:$true] %s49
      %s51 = sshll.u32 %s2, 4
      %s52 = int_to_ptr.hbm [resolvable:$true] %s51
      %54 = dma.vmem_to_hbm [thread:$0]  %s50, 256, %s52, [#allocation4]
    $region17: #{tpu_custom_call.1} parent=1 // pred_fallthru
      _
    // Predicated region
    $region18: #{tpu_custom_call.1} parent=1 // pred_check
      _
    $region19: #{tpu_custom_call.1} parent=1 // pred_check_branch
      %56 = sbr.rel (0) target = $region21
    $region20: #{tpu_custom_call.1} parent=1 // pred_region
      %58 = dma.done [#allocation4], 256
    $region21: #{tpu_custom_call.1} parent=1 // pred_fallthru
      _
    %59 = vsyncpa [#allocation3], 1
    %60 = vsyncpa [#allocation4], 1

</llo_original>
